<compile_context>
chip_gen: v5e
topology: v5e:2x2
jax: 0.10.0
libtpu: 0.0.40
codegen_flags: <defaults>
</compile_context>

<pallas_src>
import jax
import jax.numpy as jnp
from jax.experimental import pallas as pl
from jax.experimental.pallas import tpu as pltpu

# ---------------- model hyper-parameters (E == H so per-layer weights stack) ----------
OUTPUT_DIM = 16   # vocab size V
HIDDEN_DIM = 32   # H
EMBED_DIM = 32    # E
NUM_LAYERS = 2    # L
BATCH = 8         # B
SEQ_LEN = 6       # T decode steps fused per kernel call (demo value)

V, H, E, L = OUTPUT_DIM, HIDDEN_DIM, EMBED_DIM, NUM_LAYERS
assert E == H, "stacked per-layer GRU weights require embed_dim == hidden_dim"

# ---------------- packed-parameter slab layout (f32, width 32) ------------------------
SLAB_W = H                      # 32 lanes; V (=16) fits in cols [:V]
OFF_EMB = 0                     # emb_w: (V, E)
OFF_GATE = OFF_EMB + V          # per layer l, gate g (0=r,1=z,2=n): w_ih then w_hh


def _wih_off(l, g):
    return OFF_GATE + (l * 6 + g) * H


def _whh_off(l, g):
    return OFF_GATE + (l * 6 + 3 + g) * H


OFF_OUTW = OFF_GATE + L * 6 * H       # out_w: (H, V) in cols [:V]
OFF_BIAS = OFF_OUTW + H               # per layer: [b_r(folded), b_z(folded), b_ih_n, b_hh_n]


def _bias_off(l, k):
    return OFF_BIAS + l * 4 + k


OFF_OUTB = OFF_BIAS + L * 4           # out_b in cols [:V]
SLAB_ROWS = ((OFF_OUTB + 1 + 7) // 8) * 8


# ---------------- kernel ---------------------------------------------------------------
def decoder_kernel(idx_ref, slab_ref, h0_ref, pred_ref, h_out_ref, x_scr, h_scr):
    TB = idx_ref.shape[0]              # T * B
    B = h0_ref.shape[1]
    T = TB // B

    # carry hidden state across timesteps in VMEM scratch
    h_scr[...] = h0_ref[...]

    # Embedding lookup for ALL T*B tokens at once (one-hot @ table), then ReLU.
    # NOTE: out-of-range token ids silently yield a zero embedding (PyTorch would raise).
    idx = idx_ref[...]                                              # (T*B, 1) int32
    iota = jax.lax.broadcasted_iota(jnp.int32, (TB, V), 1)          # (T*B, V)
    onehot = (iota == idx).astype(jnp.float32)
    emb_w = slab_ref[OFF_EMB:OFF_EMB + V, :]                        # (V, E)
    x_scr[...] = jnp.maximum(
        jnp.dot(onehot, emb_w, preferred_element_type=jnp.float32), 0.0)

    @pl.loop(0, T)
    def _step(t):
        row = pl.multiple_of(t * B, B)                              # B = 8 -> sublane aligned
        x = x_scr[pl.ds(row, B), :]                                 # (B, E)

        for l in range(L):                                          # L is tiny & static
            h_prev = h_scr[l]                                       # (B, H)

            def wih(g, _l=l):
                o = _wih_off(_l, g)
                return slab_ref[o:o + H, :]                         # (E, H)

            def whh(g, _l=l):
                o = _whh_off(_l, g)
                return slab_ref[o:o + H, :]                         # (H, H)

            def bias(k, _l=l):
                o = _bias_off(_l, k)
                return slab_ref[o:o + 1, :]                         # (1, H)

            def dot(a, b):
                return jnp.dot(a, b, preferred_element_type=jnp.float32)

            # per-gate dots: each result is its own (B, H) tile -> no lane-offset slices
            r = jax.nn.sigmoid(dot(x, wih(0)) + dot(h_prev, whh(0)) + bias(0))
            z = jax.nn.sigmoid(dot(x, wih(1)) + dot(h_prev, whh(1)) + bias(1))
            n = jnp.tanh(dot(x, wih(2)) + bias(2) + r * (dot(h_prev, whh(2)) + bias(3)))
            h_new = (1.0 - z) * n + z * h_prev                      # (B, H)
            h_scr[l] = h_new
            x = h_new                                               # feed next layer

        # Linear + LogSoftmax(dim=1)
        out_w = slab_ref[OFF_OUTW:OFF_OUTW + H, :V]                 # (H, V)
        out_b = slab_ref[OFF_OUTB:OFF_OUTB + 1, :V]                 # (1, V)
        logits = jnp.dot(x, out_w, preferred_element_type=jnp.float32) + out_b
        m = jnp.max(logits, axis=1, keepdims=True)
        shifted = logits - m
        lse = jnp.log(jnp.sum(jnp.exp(shifted), axis=1, keepdims=True))
        pred_ref[pl.ds(row, B), :] = shifted - lse

    h_out_ref[...] = h_scr[...]


# ---------------- wrappers --------------------------------------------------------------
def decoder_forward_seq(tokens, h0, slab):
    """tokens: (T, B) int32 ids, h0: (L, B, H) f32, slab: packed params (SLAB_ROWS, 32)."""
    T, B = tokens.shape
    Lh, _, Hh = h0.shape
    idx2d = tokens.reshape(T * B, 1).astype(jnp.int32)
    vmem = pl.BlockSpec(memory_space=pltpu.MemorySpace.VMEM)
    pred, h_new = pl.pallas_call(
        decoder_kernel,
        out_shape=(jax.ShapeDtypeStruct((T * B, V), jnp.float32),
                   jax.ShapeDtypeStruct((Lh, B, Hh), jnp.float32)),
        in_specs=[vmem, vmem, vmem],
        out_specs=(vmem, vmem),
        scratch_shapes=[pltpu.VMEM((T * B, E), jnp.float32),   # embedded inputs
                        pltpu.VMEM((Lh, B, Hh), jnp.float32)],  # hidden carry
    )(idx2d, slab, h0)
    return pred.reshape(T, B, V), h_new


def decoder_forward(idx, h0, slab):
    """Single-step forward, semantics of PyTorch Decoder.forward: idx (B,), h0 (L,B,H)."""
    pred, h_new = decoder_forward_seq(idx.reshape(1, -1), h0, slab)
    return pred[0], h_new


# ---------------- parameter init (PyTorch-style layout) + packing ------------------------
def init_params(key):
    ks = jax.random.split(key, 7)
    s = 0.1
    return {
        "emb_w": s * jax.random.normal(ks[0], (V, E), jnp.float32),           # (V, E)
        "w_ih": s * jax.random.normal(ks[1], (L, 3 * H, H), jnp.float32),     # (L, 3H, in)
        "w_hh": s * jax.random.normal(ks[2], (L, 3 * H, H), jnp.float32),     # (L, 3H, H)
        "b_ih": s * jax.random.normal(ks[3], (L, 3 * H), jnp.float32),
        "b_hh": s * jax.random.normal(ks[4], (L, 3 * H), jnp.float32),
        "out_w": s * jax.random.normal(ks[5], (V, H), jnp.float32),           # (V, H)
        "out_b": s * jax.random.normal(ks[6], (V,), jnp.float32),
    }


def pack_params(p):
    """Pack all weights/biases into one (SLAB_ROWS, 32) f32 slab (per-gate, transposed)."""
    slab = jnp.zeros((SLAB_ROWS, SLAB_W), jnp.float32)
    slab = slab.at[OFF_EMB:OFF_EMB + V, :E].set(p["emb_w"])
    for l in range(L):
        Wih, Whh = p["w_ih"][l], p["w_hh"][l]
        bih, bhh = p["b_ih"][l], p["b_hh"][l]
        for g in range(3):                                   # 0=r, 1=z, 2=n
            slab = slab.at[_wih_off(l, g):_wih_off(l, g) + H, :H].set(
                Wih[g * H:(g + 1) * H, :].T)
            slab = slab.at[_whh_off(l, g):_whh_off(l, g) + H, :H].set(
                Whh[g * H:(g + 1) * H, :].T)
        slab = slab.at[_bias_off(l, 0), :H].set(bih[0:H] + bhh[0:H])          # folded b_r
        slab = slab.at[_bias_off(l, 1), :H].set(bih[H:2 * H] + bhh[H:2 * H])  # folded b_z
        slab = slab.at[_bias_off(l, 2), :H].set(bih[2 * H:3 * H])             # b_ih_n
        slab = slab.at[_bias_off(l, 3), :H].set(bhh[2 * H:3 * H])             # b_hh_n
    slab = slab.at[OFF_OUTW:OFF_OUTW + H, :V].set(p["out_w"].T)
    slab = slab.at[OFF_OUTB, :V].set(p["out_b"])
    return slab


# ---------------- pure-JAX reference (mirrors the PyTorch module) -------------------------
def reference_step(idx, h, p):
    x = jnp.maximum(p["emb_w"][idx], 0.0)
    hs = []
    for l in range(L):
        gi = x @ p["w_ih"][l].T + p["b_ih"][l]
        gh = h[l] @ p["w_hh"][l].T + p["b_hh"][l]
        r = jax.nn.sigmoid(gi[:, :H] + gh[:, :H])
        z = jax.nn.sigmoid(gi[:, H:2 * H] + gh[:, H:2 * H])
        n = jnp.tanh(gi[:, 2 * H:] + r * gh[:, 2 * H:])
        hn = (1.0 - z) * n + z * h[l]
        hs.append(hn)
        x = hn
    logits = x @ p["out_w"].T + p["out_b"]
    return jax.nn.log_softmax(logits, axis=1), jnp.stack(hs, axis=0)


def reference_seq(tokens, h0, p):
    preds, h = [], h0
    for t in range(tokens.shape[0]):
        pr, h = reference_step(tokens[t], h, p)
        preds.append(pr)
    return jnp.stack(preds, axis=0), h


if __name__ == "__main__":
    key = jax.random.PRNGKey(0)
    k_p, k_i, k_h = jax.random.split(key, 3)

    params = init_params(k_p)
    slab = pack_params(params)
    tokens = jax.random.randint(k_i, (SEQ_LEN, BATCH), 0, OUTPUT_DIM, dtype=jnp.int32)
    h0 = 0.1 * jax.random.normal(k_h, (NUM_LAYERS, BATCH, HIDDEN_DIM), jnp.float32)

    # fused multi-step decode (T steps in one kernel call)
    pred_seq, h_seq = decoder_forward_seq(tokens, h0, slab)
    jax.block_until_ready((pred_seq, h_seq))

    # single-step call (exact PyTorch forward signature semantics)
    pred_1, h_1 = decoder_forward(tokens[0], h0, slab)
    jax.block_until_ready((pred_1, h_1))

    ref_seq_p, ref_seq_h = reference_seq(tokens, h0, params)
    ref1_p, ref1_h = reference_step(tokens[0], h0, params)

    assert jnp.allclose(pred_seq, ref_seq_p, atol=1e-4, rtol=1e-4)
    assert jnp.allclose(h_seq, ref_seq_h, atol=1e-4, rtol=1e-4)
    assert jnp.allclose(pred_1, ref1_p, atol=1e-4, rtol=1e-4)
    assert jnp.allclose(h_1, ref1_h, atol=1e-4, rtol=1e-4)

    print("KERNEL_OK")
</pallas_src>

<mosaic_0001>
module attributes {stable_mosaic.version = 11 : i64} {
  func.func @decoder_kernel(%arg0: memref<48x1xi32, #tpu.memory_space<vmem>>, %arg1: memref<448x32xf32, #tpu.memory_space<vmem>>, %arg2: memref<2x8x32xf32, #tpu.memory_space<vmem>>, %arg3: memref<48x16xf32, #tpu.memory_space<vmem>>, %arg4: memref<2x8x32xf32, #tpu.memory_space<vmem>>, %arg5: memref<48x32xf32, #tpu.memory_space<vmem>>, %arg6: memref<2x8x32xf32, #tpu.memory_space<vmem>>) attributes {dimension_semantics = [], scalar_prefetch = 0 : i64, scratch_operands = 2 : i64, tpu.core_type = #tpu.core_type<tc>} {
    %c0 = arith.constant 0 : index
    %c0_0 = arith.constant 0 : index
    %c0_1 = arith.constant 0 : index
    %0 = vector.load %arg2[%c0, %c0_0, %c0_1] : memref<2x8x32xf32, #tpu.memory_space<vmem>>, vector<2x8x32xf32>
    %c0_2 = arith.constant 0 : index
    %c0_3 = arith.constant 0 : index
    %c0_4 = arith.constant 0 : index
    %1 = vector.load %arg6[%c0_2, %c0_3, %c0_4] : memref<2x8x32xf32, #tpu.memory_space<vmem>>, vector<2x8x32xf32>
    tpu.vector_store %arg6[%c0_2, %c0_3, %c0_4], %0 {strides = array<i32>} : memref<2x8x32xf32, #tpu.memory_space<vmem>>, vector<2x8x32xf32>,
    %c0_5 = arith.constant 0 : index
    %c0_6 = arith.constant 0 : index
    %2 = vector.load %arg0[%c0_5, %c0_6] : memref<48x1xi32, #tpu.memory_space<vmem>>, vector<48x1xi32>
    %3 = tpu.iota {dimensions = array<i32: 1>} : vector<48x16xi32>
    %4 = vector.broadcast %2 : vector<48x1xi32> to vector<48x16xi32>
    %5 = arith.cmpi eq, %3, %4 : vector<48x16xi32>
    %6 = arith.extui %5 : vector<48x16xi1> to vector<48x16xi32>
    %7 = arith.sitofp %6 : vector<48x16xi32> to vector<48x16xf32>
    %c0_7 = arith.constant 0 : index
    %c0_8 = arith.constant 0 : index
    %8 = vector.load %arg1[%c0_7, %c0_8] : memref<448x32xf32, #tpu.memory_space<vmem>>, vector<16x32xf32>
    %cst = arith.constant dense<0.000000e+00> : vector<48x32xf32>
    %9 = tpu.matmul %7, %8, %cst {dimension_numbers = #tpu.dot_dimension_numbers<[1], [0], [0], [1], [0, 0, 1, 1], [], []>} : vector<48x16xf32>, vector<16x32xf32>, vector<48x32xf32> -> vector<48x32xf32>
    %cst_9 = arith.constant 0.000000e+00 : f32
    %10 = vector.broadcast %cst_9 : f32 to vector<48x32xf32>
    %11 = arith.maximumf %9, %10 : vector<48x32xf32>
    %c0_10 = arith.constant 0 : index
    %c0_11 = arith.constant 0 : index
    %12 = vector.load %arg5[%c0_10, %c0_11] : memref<48x32xf32, #tpu.memory_space<vmem>>, vector<48x32xf32>
    tpu.vector_store %arg5[%c0_10, %c0_11], %11 {strides = array<i32>} : memref<48x32xf32, #tpu.memory_space<vmem>>, vector<48x32xf32>,
    %c0_i32 = arith.constant 0 : i32
    %c6_i32 = arith.constant 6 : i32
    %13 = arith.addi %c0_i32, %c6_i32 : i32
    %c1_i32 = arith.constant 1 : i32
    scf.for %arg7 = %c0_i32 to %13 step %c1_i32  : i32 {
      %c1_i32_19 = arith.constant 1 : i32
      %16 = arith.muli %arg7, %c1_i32_19 : i32
      %c0_i32_20 = arith.constant 0 : i32
      %17 = arith.addi %c0_i32_20, %16 : i32
      %c8_i32 = arith.constant 8 : i32
      %18 = arith.muli %17, %c8_i32 : i32
      %19 = tpu.assume_multiple %18, 8 : i32
      %20 = arith.index_cast %19 : i32 to index
      %c0_21 = arith.constant 0 : index
      %21 = vector.load %arg5[%20, %c0_21] : memref<48x32xf32, #tpu.memory_space<vmem>>, vector<8x32xf32>
      %c0_22 = arith.constant 0 : index
      %c0_23 = arith.constant 0 : index
      %c0_24 = arith.constant 0 : index
      %22 = vector.load %arg6[%c0_22, %c0_23, %c0_24] : memref<2x8x32xf32, #tpu.memory_space<vmem>>, vector<1x8x32xf32>
      %23 = vector.shape_cast %22 : vector<1x8x32xf32> to vector<8x32xf32>
      %c16 = arith.constant 16 : index
      %c0_25 = arith.constant 0 : index
      %24 = vector.load %arg1[%c16, %c0_25] : memref<448x32xf32, #tpu.memory_space<vmem>>, vector<32x32xf32>
      %cst_26 = arith.constant dense<0.000000e+00> : vector<8x32xf32>
      %25 = tpu.matmul %21, %24, %cst_26 {dimension_numbers = #tpu.dot_dimension_numbers<[1], [0], [0], [1], [0, 0, 1, 1], [], []>} : vector<8x32xf32>, vector<32x32xf32>, vector<8x32xf32> -> vector<8x32xf32>
      %c112 = arith.constant 112 : index
      %c0_27 = arith.constant 0 : index
      %26 = vector.load %arg1[%c112, %c0_27] : memref<448x32xf32, #tpu.memory_space<vmem>>, vector<32x32xf32>
      %cst_28 = arith.constant dense<0.000000e+00> : vector<8x32xf32>
      %27 = tpu.matmul %23, %26, %cst_28 {dimension_numbers = #tpu.dot_dimension_numbers<[1], [0], [0], [1], [0, 0, 1, 1], [], []>} : vector<8x32xf32>, vector<32x32xf32>, vector<8x32xf32> -> vector<8x32xf32>
      %28 = arith.addf %25, %27 : vector<8x32xf32>
      %c432 = arith.constant 432 : index
      %c0_29 = arith.constant 0 : index
      %29 = vector.load %arg1[%c432, %c0_29] : memref<448x32xf32, #tpu.memory_space<vmem>>, vector<1x32xf32>
      %30 = vector.broadcast %29 : vector<1x32xf32> to vector<8x32xf32>
      %31 = arith.addf %28, %30 : vector<8x32xf32>
      %32 = arith.negf %31 : vector<8x32xf32>
      %33 = math.exp %32 : vector<8x32xf32>
      %cst_30 = arith.constant 1.000000e+00 : f32
      %34 = vector.broadcast %cst_30 : f32 to vector<8x32xf32>
      %35 = arith.addf %34, %33 : vector<8x32xf32>
      %36 = arith.divf %34, %35 : vector<8x32xf32>
      %c48 = arith.constant 48 : index
      %c0_31 = arith.constant 0 : index
      %37 = vector.load %arg1[%c48, %c0_31] : memref<448x32xf32, #tpu.memory_space<vmem>>, vector<32x32xf32>
      %cst_32 = arith.constant dense<0.000000e+00> : vector<8x32xf32>
      %38 = tpu.matmul %21, %37, %cst_32 {dimension_numbers = #tpu.dot_dimension_numbers<[1], [0], [0], [1], [0, 0, 1, 1], [], []>} : vector<8x32xf32>, vector<32x32xf32>, vector<8x32xf32> -> vector<8x32xf32>
      %c144 = arith.constant 144 : index
      %c0_33 = arith.constant 0 : index
      %39 = vector.load %arg1[%c144, %c0_33] : memref<448x32xf32, #tpu.memory_space<vmem>>, vector<32x32xf32>
      %cst_34 = arith.constant dense<0.000000e+00> : vector<8x32xf32>
      %40 = tpu.matmul %23, %39, %cst_34 {dimension_numbers = #tpu.dot_dimension_numbers<[1], [0], [0], [1], [0, 0, 1, 1], [], []>} : vector<8x32xf32>, vector<32x32xf32>, vector<8x32xf32> -> vector<8x32xf32>
      %41 = arith.addf %38, %40 : vector<8x32xf32>
      %c433 = arith.constant 433 : index
      %c0_35 = arith.constant 0 : index
      %42 = vector.load %arg1[%c433, %c0_35] : memref<448x32xf32, #tpu.memory_space<vmem>>, vector<1x32xf32>
      %43 = vector.broadcast %42 : vector<1x32xf32> to vector<8x32xf32>
      %44 = arith.addf %41, %43 : vector<8x32xf32>
      %45 = arith.negf %44 : vector<8x32xf32>
      %46 = math.exp %45 : vector<8x32xf32>
      %cst_36 = arith.constant 1.000000e+00 : f32
      %47 = vector.broadcast %cst_36 : f32 to vector<8x32xf32>
      %48 = arith.addf %47, %46 : vector<8x32xf32>
      %49 = arith.divf %47, %48 : vector<8x32xf32>
      %c80 = arith.constant 80 : index
      %c0_37 = arith.constant 0 : index
      %50 = vector.load %arg1[%c80, %c0_37] : memref<448x32xf32, #tpu.memory_space<vmem>>, vector<32x32xf32>
      %cst_38 = arith.constant dense<0.000000e+00> : vector<8x32xf32>
      %51 = tpu.matmul %21, %50, %cst_38 {dimension_numbers = #tpu.dot_dimension_numbers<[1], [0], [0], [1], [0, 0, 1, 1], [], []>} : vector<8x32xf32>, vector<32x32xf32>, vector<8x32xf32> -> vector<8x32xf32>
      %c434 = arith.constant 434 : index
      %c0_39 = arith.constant 0 : index
      %52 = vector.load %arg1[%c434, %c0_39] : memref<448x32xf32, #tpu.memory_space<vmem>>, vector<1x32xf32>
      %53 = vector.broadcast %52 : vector<1x32xf32> to vector<8x32xf32>
      %54 = arith.addf %51, %53 : vector<8x32xf32>
      %c176 = arith.constant 176 : index
      %c0_40 = arith.constant 0 : index
      %55 = vector.load %arg1[%c176, %c0_40] : memref<448x32xf32, #tpu.memory_space<vmem>>, vector<32x32xf32>
      %cst_41 = arith.constant dense<0.000000e+00> : vector<8x32xf32>
      %56 = tpu.matmul %23, %55, %cst_41 {dimension_numbers = #tpu.dot_dimension_numbers<[1], [0], [0], [1], [0, 0, 1, 1], [], []>} : vector<8x32xf32>, vector<32x32xf32>, vector<8x32xf32> -> vector<8x32xf32>
      %c435 = arith.constant 435 : index
      %c0_42 = arith.constant 0 : index
      %57 = vector.load %arg1[%c435, %c0_42] : memref<448x32xf32, #tpu.memory_space<vmem>>, vector<1x32xf32>
      %58 = vector.broadcast %57 : vector<1x32xf32> to vector<8x32xf32>
      %59 = arith.addf %56, %58 : vector<8x32xf32>
      %60 = arith.mulf %36, %59 : vector<8x32xf32>
      %61 = arith.addf %54, %60 : vector<8x32xf32>
      %62 = math.tanh %61 : vector<8x32xf32>
      %cst_43 = arith.constant 1.000000e+00 : f32
      %63 = vector.broadcast %cst_43 : f32 to vector<8x32xf32>
      %64 = arith.subf %63, %49 : vector<8x32xf32>
      %65 = arith.mulf %64, %62 : vector<8x32xf32>
      %66 = arith.mulf %49, %23 : vector<8x32xf32>
      %67 = arith.addf %65, %66 : vector<8x32xf32>
      %c0_44 = arith.constant 0 : index
      %c0_45 = arith.constant 0 : index
      %c0_46 = arith.constant 0 : index
      %68 = vector.load %arg6[%c0_44, %c0_45, %c0_46] : memref<2x8x32xf32, #tpu.memory_space<vmem>>, vector<1x8x32xf32>
      %69 = vector.shape_cast %68 : vector<1x8x32xf32> to vector<8x32xf32>
      %70 = vector.shape_cast %67 : vector<8x32xf32> to vector<1x8x32xf32>
      tpu.vector_store %arg6[%c0_44, %c0_45, %c0_46], %70 {strides = array<i32>} : memref<2x8x32xf32, #tpu.memory_space<vmem>>, vector<1x8x32xf32>,
      %c1 = arith.constant 1 : index
      %c0_47 = arith.constant 0 : index
      %c0_48 = arith.constant 0 : index
      %71 = vector.load %arg6[%c1, %c0_47, %c0_48] : memref<2x8x32xf32, #tpu.memory_space<vmem>>, vector<1x8x32xf32>
      %72 = vector.shape_cast %71 : vector<1x8x32xf32> to vector<8x32xf32>
      %c208 = arith.constant 208 : index
      %c0_49 = arith.constant 0 : index
      %73 = vector.load %arg1[%c208, %c0_49] : memref<448x32xf32, #tpu.memory_space<vmem>>, vector<32x32xf32>
      %cst_50 = arith.constant dense<0.000000e+00> : vector<8x32xf32>
      %74 = tpu.matmul %67, %73, %cst_50 {dimension_numbers = #tpu.dot_dimension_numbers<[1], [0], [0], [1], [0, 0, 1, 1], [], []>} : vector<8x32xf32>, vector<32x32xf32>, vector<8x32xf32> -> vector<8x32xf32>
      %c304 = arith.constant 304 : index
      %c0_51 = arith.constant 0 : index
      %75 = vector.load %arg1[%c304, %c0_51] : memref<448x32xf32, #tpu.memory_space<vmem>>, vector<32x32xf32>
      %cst_52 = arith.constant dense<0.000000e+00> : vector<8x32xf32>
      %76 = tpu.matmul %72, %75, %cst_52 {dimension_numbers = #tpu.dot_dimension_numbers<[1], [0], [0], [1], [0, 0, 1, 1], [], []>} : vector<8x32xf32>, vector<32x32xf32>, vector<8x32xf32> -> vector<8x32xf32>
      %77 = arith.addf %74, %76 : vector<8x32xf32>
      %c436 = arith.constant 436 : index
      %c0_53 = arith.constant 0 : index
      %78 = vector.load %arg1[%c436, %c0_53] : memref<448x32xf32, #tpu.memory_space<vmem>>, vector<1x32xf32>
      %79 = vector.broadcast %78 : vector<1x32xf32> to vector<8x32xf32>
      %80 = arith.addf %77, %79 : vector<8x32xf32>
      %81 = arith.negf %80 : vector<8x32xf32>
      %82 = math.exp %81 : vector<8x32xf32>
      %cst_54 = arith.constant 1.000000e+00 : f32
      %83 = vector.broadcast %cst_54 : f32 to vector<8x32xf32>
      %84 = arith.addf %83, %82 : vector<8x32xf32>
      %85 = arith.divf %83, %84 : vector<8x32xf32>
      %c240 = arith.constant 240 : index
      %c0_55 = arith.constant 0 : index
      %86 = vector.load %arg1[%c240, %c0_55] : memref<448x32xf32, #tpu.memory_space<vmem>>, vector<32x32xf32>
      %cst_56 = arith.constant dense<0.000000e+00> : vector<8x32xf32>
      %87 = tpu.matmul %67, %86, %cst_56 {dimension_numbers = #tpu.dot_dimension_numbers<[1], [0], [0], [1], [0, 0, 1, 1], [], []>} : vector<8x32xf32>, vector<32x32xf32>, vector<8x32xf32> -> vector<8x32xf32>
      %c336 = arith.constant 336 : index
      %c0_57 = arith.constant 0 : index
      %88 = vector.load %arg1[%c336, %c0_57] : memref<448x32xf32, #tpu.memory_space<vmem>>, vector<32x32xf32>
      %cst_58 = arith.constant dense<0.000000e+00> : vector<8x32xf32>
      %89 = tpu.matmul %72, %88, %cst_58 {dimension_numbers = #tpu.dot_dimension_numbers<[1], [0], [0], [1], [0, 0, 1, 1], [], []>} : vector<8x32xf32>, vector<32x32xf32>, vector<8x32xf32> -> vector<8x32xf32>
      %90 = arith.addf %87, %89 : vector<8x32xf32>
      %c437 = arith.constant 437 : index
      %c0_59 = arith.constant 0 : index
      %91 = vector.load %arg1[%c437, %c0_59] : memref<448x32xf32, #tpu.memory_space<vmem>>, vector<1x32xf32>
      %92 = vector.broadcast %91 : vector<1x32xf32> to vector<8x32xf32>
      %93 = arith.addf %90, %92 : vector<8x32xf32>
      %94 = arith.negf %93 : vector<8x32xf32>
      %95 = math.exp %94 : vector<8x32xf32>
      %cst_60 = arith.constant 1.000000e+00 : f32
      %96 = vector.broadcast %cst_60 : f32 to vector<8x32xf32>
      %97 = arith.addf %96, %95 : vector<8x32xf32>
      %98 = arith.divf %96, %97 : vector<8x32xf32>
      %c272 = arith.constant 272 : index
      %c0_61 = arith.constant 0 : index
      %99 = vector.load %arg1[%c272, %c0_61] : memref<448x32xf32, #tpu.memory_space<vmem>>, vector<32x32xf32>
      %cst_62 = arith.constant dense<0.000000e+00> : vector<8x32xf32>
      %100 = tpu.matmul %67, %99, %cst_62 {dimension_numbers = #tpu.dot_dimension_numbers<[1], [0], [0], [1], [0, 0, 1, 1], [], []>} : vector<8x32xf32>, vector<32x32xf32>, vector<8x32xf32> -> vector<8x32xf32>
      %c438 = arith.constant 438 : index
      %c0_63 = arith.constant 0 : index
      %101 = vector.load %arg1[%c438, %c0_63] : memref<448x32xf32, #tpu.memory_space<vmem>>, vector<1x32xf32>
      %102 = vector.broadcast %101 : vector<1x32xf32> to vector<8x32xf32>
      %103 = arith.addf %100, %102 : vector<8x32xf32>
      %c368 = arith.constant 368 : index
      %c0_64 = arith.constant 0 : index
      %104 = vector.load %arg1[%c368, %c0_64] : memref<448x32xf32, #tpu.memory_space<vmem>>, vector<32x32xf32>
      %cst_65 = arith.constant dense<0.000000e+00> : vector<8x32xf32>
      %105 = tpu.matmul %72, %104, %cst_65 {dimension_numbers = #tpu.dot_dimension_numbers<[1], [0], [0], [1], [0, 0, 1, 1], [], []>} : vector<8x32xf32>, vector<32x32xf32>, vector<8x32xf32> -> vector<8x32xf32>
      %c439 = arith.constant 439 : index
      %c0_66 = arith.constant 0 : index
      %106 = vector.load %arg1[%c439, %c0_66] : memref<448x32xf32, #tpu.memory_space<vmem>>, vector<1x32xf32>
      %107 = vector.broadcast %106 : vector<1x32xf32> to vector<8x32xf32>
      %108 = arith.addf %105, %107 : vector<8x32xf32>
      %109 = arith.mulf %85, %108 : vector<8x32xf32>
      %110 = arith.addf %103, %109 : vector<8x32xf32>
      %111 = math.tanh %110 : vector<8x32xf32>
      %cst_67 = arith.constant 1.000000e+00 : f32
      %112 = vector.broadcast %cst_67 : f32 to vector<8x32xf32>
      %113 = arith.subf %112, %98 : vector<8x32xf32>
      %114 = arith.mulf %113, %111 : vector<8x32xf32>
      %115 = arith.mulf %98, %72 : vector<8x32xf32>
      %116 = arith.addf %114, %115 : vector<8x32xf32>
      %c1_68 = arith.constant 1 : index
      %c0_69 = arith.constant 0 : index
      %c0_70 = arith.constant 0 : index
      %117 = vector.load %arg6[%c1_68, %c0_69, %c0_70] : memref<2x8x32xf32, #tpu.memory_space<vmem>>, vector<1x8x32xf32>
      %118 = vector.shape_cast %117 : vector<1x8x32xf32> to vector<8x32xf32>
      %119 = vector.shape_cast %116 : vector<8x32xf32> to vector<1x8x32xf32>
      tpu.vector_store %arg6[%c1_68, %c0_69, %c0_70], %119 {strides = array<i32>} : memref<2x8x32xf32, #tpu.memory_space<vmem>>, vector<1x8x32xf32>,
      %c400 = arith.constant 400 : index
      %c0_71 = arith.constant 0 : index
      %120 = vector.load %arg1[%c400, %c0_71] : memref<448x32xf32, #tpu.memory_space<vmem>>, vector<32x16xf32>
      %c440 = arith.constant 440 : index
      %c0_72 = arith.constant 0 : index
      %121 = vector.load %arg1[%c440, %c0_72] : memref<448x32xf32, #tpu.memory_space<vmem>>, vector<1x16xf32>
      %cst_73 = arith.constant dense<0.000000e+00> : vector<8x16xf32>
      %122 = tpu.matmul %116, %120, %cst_73 {dimension_numbers = #tpu.dot_dimension_numbers<[1], [0], [0], [1], [0, 0, 1, 1], [], []>} : vector<8x32xf32>, vector<32x16xf32>, vector<8x16xf32> -> vector<8x16xf32>
      %123 = vector.broadcast %121 : vector<1x16xf32> to vector<8x16xf32>
      %124 = arith.addf %122, %123 : vector<8x16xf32>
      %cst_74 = arith.constant dense<0xFF800000> : vector<8xf32>
      %125 = vector.multi_reduction <maximumf>, %124, %cst_74 [1] : vector<8x16xf32> to vector<8xf32>
      %126 = vector.shape_cast %125 : vector<8xf32> to vector<8x1xf32>
      %127 = vector.broadcast %126 : vector<8x1xf32> to vector<8x16xf32>
      %128 = arith.subf %124, %127 : vector<8x16xf32>
      %129 = math.exp %128 : vector<8x16xf32>
      %cst_75 = arith.constant dense<0.000000e+00> : vector<8xf32>
      %130 = vector.multi_reduction <add>, %129, %cst_75 [1] : vector<8x16xf32> to vector<8xf32>
      %131 = vector.shape_cast %130 : vector<8xf32> to vector<8x1xf32>
      %132 = math.log %131 : vector<8x1xf32>
      %133 = vector.broadcast %132 : vector<8x1xf32> to vector<8x16xf32>
      %134 = arith.subf %128, %133 : vector<8x16xf32>
      %135 = arith.index_cast %19 : i32 to index
      %c0_76 = arith.constant 0 : index
      %136 = vector.load %arg3[%135, %c0_76] : memref<48x16xf32, #tpu.memory_space<vmem>>, vector<8x16xf32>
      tpu.vector_store %arg3[%135, %c0_76], %134 {strides = array<i32>} : memref<48x16xf32, #tpu.memory_space<vmem>>, vector<8x16xf32>,
    }
    %c6_i32_12 = arith.constant 6 : i32
    %c0_13 = arith.constant 0 : index
    %c0_14 = arith.constant 0 : index
    %c0_15 = arith.constant 0 : index
    %14 = vector.load %arg6[%c0_13, %c0_14, %c0_15] : memref<2x8x32xf32, #tpu.memory_space<vmem>>, vector<2x8x32xf32>
    %c0_16 = arith.constant 0 : index
    %c0_17 = arith.constant 0 : index
    %c0_18 = arith.constant 0 : index
    %15 = vector.load %arg4[%c0_16, %c0_17, %c0_18] : memref<2x8x32xf32, #tpu.memory_space<vmem>>, vector<2x8x32xf32>
    tpu.vector_store %arg4[%c0_16, %c0_17, %c0_18], %14 {strides = array<i32>} : memref<2x8x32xf32, #tpu.memory_space<vmem>>, vector<2x8x32xf32>,
    return
  }
}

</mosaic_0001>

<llo_original>
// kernel: tpu_custom_call.1
$region0: #{tpu_custom_call.1}
  #allocation0 [shape = 'u32[]', space=smem, size = 0x4, offset = 0x4, fixed_abs, tag = 'smem constant byte address 0x4 - core index']
  #allocation1 [shape = 'u32[72,128]{1,0:T(1,128)}', space=vmem, size = 0x9000, scoped, tag = 'internal scratch']
  #allocation2 [shape = 'f32[48,32]{1,0:T(8,128)}', space=vmem, size = 0x6000, scoped, tag = 'scratch operand']
  #allocation3 [shape = 'f32[2,8,32]{2,1,0:T(8,128)}', space=vmem, size = 0x2000, scoped, tag = 'scratch operand']
  %s0 = inlined_call_operand.vmem [shape: s32[48,1], index: 0, kind: input, shape index: {}]
  %s1 = inlined_call_operand.vmem [shape: f32[448,32], index: 1, kind: input, shape index: {}]
  %s2 = inlined_call_operand.vmem [shape: f32[2,8,32], index: 2, kind: input, shape index: {}]
  %s3 = inlined_call_operand.vmem [shape: f32[48,16], index: 3, kind: output, shape index: {0}]
  %s4 = inlined_call_operand.hbm [shape: f32[2,8,32], index: 4, kind: output, shape index: {1}]
  %5 = xla_tuple %s3, %s4
  %s6 = sld [smem:[#allocation0]]
  $region37: #{tpu_custom_call.1} parent=0
    _
  %s8 = ssub.s32 1, %s6
  %s9 = scalar_select 0, %s8, %s6
  $region1: #{tpu_custom_call.1} parent=0
    #allocation4 [shape = 'u8[8192]{0}', space=vmem, size = 0x2000, scoped, tag = 'output window, operand 1, single buffered']
    #allocation5 [shape = 's32[1]{0}', space=sflag, size = 0x4, scoped, tag = 'scoped memory for tpu_custom_call.1']
    %10 = vsyncpa [#allocation5], 0
    // Predicated region
    $region2: #{tpu_custom_call.1} parent=1 // pred_check
      _
    $region3: #{tpu_custom_call.1} parent=1 // pred_check_branch
      %12 = sbr.rel (0) target = $region5
    $region4: #{tpu_custom_call.1} parent=1 // pred_region
      _
    $region5: #{tpu_custom_call.1} parent=1 // pred_fallthru
      _
    // Predicated region
    $region6: #{tpu_custom_call.1} parent=1 // pred_check
      _
    $region7: #{tpu_custom_call.1} parent=1 // pred_check_branch
      %14 = sbr.rel (0) target = $region9
    $region8: #{tpu_custom_call.1} parent=1 // pred_region
      _
    $region9: #{tpu_custom_call.1} parent=1 // pred_fallthru
      _
    // Predicated region
    $region10: #{tpu_custom_call.1} parent=1 // pred_check
      _
    $region11: #{tpu_custom_call.1} parent=1 // pred_check_branch
      %16 = sbr.rel (0) target = $region13
    $region12: #{tpu_custom_call.1} parent=1 // pred_region
      _
    $region13: #{tpu_custom_call.1} parent=1 // pred_fallthru
      _
    %v17 = vld [vmem:[%s2] sm:$0xff]
    %v18 = vld [vmem:[%s2 + $0x8] sm:$0xff]
    %vm19 = vcmask 261120
    %20 = vst.msk [vmem:[#allocation3] sm:$0xff] %vm19, %v17
    %21 = vst.msk [vmem:[#allocation3 + $0x8] sm:$0xff] %vm19, %v18
    %v22 = vld [vmem:[%s0] sm:$0xff]
    %v23 = vld [vmem:[%s0 + $0x8] sm:$0xff]
    %v24 = vld [vmem:[%s0 + $0x10] sm:$0xff]
    %v25 = vld [vmem:[%s0 + $0x18] sm:$0xff]
    %v26 = vld [vmem:[%s0 + $0x20] sm:$0xff]
    %v27 = vld [vmem:[%s0 + $0x28] sm:$0xff]
    %v28 = vlaneseq
    %v29 = vand.u32 %v28, 127
    %30 = vset.pattern.permute.xlu0 0
    %31 = vperm.xlu0 %30, %v22
    %v32 = vpop.permute.xlu0 %31
    %33 = vset.pattern.permute.xlu0 0
    %34 = vperm.xlu0 %33, %v23
    %v35 = vpop.permute.xlu0 %34
    %36 = vset.pattern.permute.xlu0 0
    %37 = vperm.xlu0 %36, %v24
    %v38 = vpop.permute.xlu0 %37
    %39 = vset.pattern.permute.xlu0 0
    %40 = vperm.xlu0 %39, %v25
    %v41 = vpop.permute.xlu0 %40
    %42 = vset.pattern.permute.xlu0 0
    %43 = vperm.xlu0 %42, %v26
    %v44 = vpop.permute.xlu0 %43
    %45 = vset.pattern.permute.xlu0 0
    %46 = vperm.xlu0 %45, %v27
    %v47 = vpop.permute.xlu0 %46
    %vm48 = vcmp.eq.s32.totalorder %v29, %v32
    %vm49 = vcmp.eq.s32.totalorder %v29, %v35
    %vm50 = vcmp.eq.s32.totalorder %v29, %v38
    %vm51 = vcmp.eq.s32.totalorder %v29, %v41
    %vm52 = vcmp.eq.s32.totalorder %v29, %v44
    %vm53 = vcmp.eq.s32.totalorder %v29, %v47
    %v54 = vsel %vm48, 1, 0
    %v55 = vsel %vm49, 1, 0
    %v56 = vsel %vm50, 1, 0
    %v57 = vsel %vm51, 1, 0
    %v58 = vsel %vm52, 1, 0
    %v59 = vsel %vm53, 1, 0
    %v60 = vcvt.s32.f32 %v54
    %v61 = vcvt.s32.f32 %v55
    %v62 = vcvt.s32.f32 %v56
    %v63 = vcvt.s32.f32 %v57
    %v64 = vcvt.s32.f32 %v58
    %v65 = vcvt.s32.f32 %v59
    %v66 = vld [vmem:[%s1] sm:$0xff]
    %v67 = vld [vmem:[%s1 + $0x8] sm:$0xff]
    %vm68 = vcmask 130048
    %v70 = vsel %vm68, %v60, 0
    %v73 = vsel %vm68, %v61, 0
    %v76 = vsel %vm68, %v62, 0
    %v79 = vsel %vm68, %v63, 0
    %v82 = vsel %vm68, %v64, 0
    %v85 = vsel %vm68, %v65, 0
    %87 = vmatpush.msra.mxu0 0.0
    %88 = vmatpush.msra.mxu0 0.0
    %89 = vmatpush.msra.mxu0 0.0
    %90 = vmatpush.msra.mxu0 0.0
    %91 = vmatpush.msra.mxu0 0.0
    %92 = vmatpush.msra.mxu0 0.0
    %93 = vmatpush.msra.mxu0 0.0
    %94 = vmatpush.msra.mxu0 0.0
    %95 = vmatpush.msra.mxu0 0.0
    %96 = vmatpush.msra.mxu0 0.0
    %97 = vmatpush.msra.mxu0 0.0
    %98 = vmatpush.msra.mxu0 0.0
    %99 = vmatpush.msra.mxu0 0.0
    %100 = vmatpush.msra.mxu0 0.0
    %101 = vmatpush.msra.mxu0 %v67
    %102 = vmatpush.msra.mxu0 %v66
    %103 = vmatmul.f32.gmra.mxu0 %v70
    %v104 = vpop.f32.mrf.mxu0
    %v105 = vadd.f32 0.0, %v104
    %106 = vmatmul.f32.gmra.mxu0 %v73
    %v107 = vpop.f32.mrf.mxu0
    %v108 = vadd.f32 0.0, %v107
    %109 = vmatmul.f32.gmra.mxu0 %v76
    %v110 = vpop.f32.mrf.mxu0
    %v111 = vadd.f32 0.0, %v110
    %112 = vmatmul.f32.gmra.mxu0 %v79
    %v113 = vpop.f32.mrf.mxu0
    %v114 = vadd.f32 0.0, %v113
    %115 = vmatmul.f32.gmra.mxu0 %v82
    %v116 = vpop.f32.mrf.mxu0
    %v117 = vadd.f32 0.0, %v116
    %118 = vmatmul.f32.gmra.mxu0 %v85
    %v119 = vpop.f32.mrf.mxu0
    %v120 = vadd.f32 0.0, %v119
    %121 = vdwg.mxu0
    %v122 = vmax.f32 %v105, 0.0
    %v123 = vmax.f32 %v108, 0.0
    %v124 = vmax.f32 %v111, 0.0
    %v125 = vmax.f32 %v114, 0.0
    %v126 = vmax.f32 %v117, 0.0
    %v127 = vmax.f32 %v120, 0.0
    %128 = vst.msk [vmem:[#allocation2] sm:$0xff] %vm19, %v122
    %129 = vst.msk [vmem:[#allocation2 + $0x8] sm:$0xff] %vm19, %v123
    %130 = vst.msk [vmem:[#allocation2 + $0x10] sm:$0xff] %vm19, %v124
    %131 = vst.msk [vmem:[#allocation2 + $0x18] sm:$0xff] %vm19, %v125
    %132 = vst.msk [vmem:[#allocation2 + $0x20] sm:$0xff] %vm19, %v126
    %133 = vst.msk [vmem:[#allocation2 + $0x28] sm:$0xff] %vm19, %v127
    loop: start=0, step=1, limit=6
    $region14: #{tpu_custom_call.1} parent=1 // loop_pre_header
      _
    $region15: #{tpu_custom_call.1} parent=1 // loop_header
      %s135 = sphi 0, %s139
      %p136 = scmp.ge.s32.totalorder %s135, 6
    $region16: #{tpu_custom_call.1} parent=1 // loop_header_branch
      %138 = sbr.rel (%p136) target = $region20
    $region17: #{tpu_custom_call.1} parent=1 // loop_body
      %s140 = smul.u32 %s135, 8
      %s141 = scalar_lea.vmem [#allocation2], %s140
      %v142 = vld [vmem:[%s141] sm:$0xff]
      %v143 = vld [vmem:[#allocation3] sm:$0xff]
      %v144 = vld [vmem:[%s1 + $0x10] sm:$0xff]
      %v145 = vld [vmem:[%s1 + $0x18] sm:$0xff]
      %v146 = vld [vmem:[%s1 + $0x20] sm:$0xff]
      %v147 = vld [vmem:[%s1 + $0x28] sm:$0xff]
      %v148 = vld [vmem:[%s1 + $0x70] sm:$0xff]
      %v149 = vld [vmem:[%s1 + $0x78] sm:$0xff]
      %v150 = vld [vmem:[%s1 + $0x80] sm:$0xff]
      %v151 = vld [vmem:[%s1 + $0x88] sm:$0xff]
      %v153 = vsel %vm19, %v143, 0
      %155 = vmatpush.msra.mxu0 0.0
      %156 = vmatpush.msra.mxu0 0.0
      %157 = vmatpush.msra.mxu0 0.0
      %158 = vmatpush.msra.mxu0 0.0
      %159 = vmatpush.msra.mxu0 0.0
      %160 = vmatpush.msra.mxu0 0.0
      %161 = vmatpush.msra.mxu0 0.0
      %162 = vmatpush.msra.mxu0 0.0
      %163 = vmatpush.msra.mxu0 0.0
      %164 = vmatpush.msra.mxu0 0.0
      %165 = vmatpush.msra.mxu0 0.0
      %166 = vmatpush.msra.mxu0 0.0
      %167 = vmatpush.msra.mxu0 %v151
      %168 = vmatpush.msra.mxu0 %v150
      %169 = vmatpush.msra.mxu0 %v149
      %170 = vmatpush.msra.mxu0 %v148
      %171 = vmatmul.f32.gmra.mxu0 %v153
      %v172 = vpop.f32.mrf.mxu0
      %v173 = vadd.f32 0.0, %v172
      %174 = vdwg.mxu0
      %v176 = vsel %vm19, %v142, 0
      %178 = vmatpush.msra.mxu0 0.0
      %179 = vmatpush.msra.mxu0 0.0
      %180 = vmatpush.msra.mxu0 0.0
      %181 = vmatpush.msra.mxu0 0.0
      %182 = vmatpush.msra.mxu0 0.0
      %183 = vmatpush.msra.mxu0 0.0
      %184 = vmatpush.msra.mxu0 0.0
      %185 = vmatpush.msra.mxu0 0.0
      %186 = vmatpush.msra.mxu0 0.0
      %187 = vmatpush.msra.mxu0 0.0
      %188 = vmatpush.msra.mxu0 0.0
      %189 = vmatpush.msra.mxu0 0.0
      %190 = vmatpush.msra.mxu0 %v147
      %191 = vmatpush.msra.mxu0 %v146
      %192 = vmatpush.msra.mxu0 %v145
      %193 = vmatpush.msra.mxu0 %v144
      %194 = vmatmul.f32.gmra.mxu0 %v176
      %v195 = vpop.f32.mrf.mxu0
      %v196 = vadd.f32 %v173, %v195
      %197 = vdwg.mxu0
      %v198 = vld [vmem:[%s1 + $0x1b0] sm:$0x1]
      %v199 = vperm.slane %v198, 0
      %v200 = vadd.f32 %v196, %v199
      %v201 = vxor.u32 %v200, 2147483648
      %v202 = vmul.f32 %v201, 1.442695
      %v203 = vpow.pop %v202
      %v204 = vadd.f32 %v203, 1.0
      %v205 = vrcp.pop %v204
      %v206 = vmul.f32 %v204, %v205
      %v207 = vsub.f32 1.0, %v206
      %v208 = vmul.f32 %v205, %v207
      %v209 = vadd.f32 %v205, %v208
      %vm210 = vweird.f32 %v204
      %vm211 = vweird.f32 %v205
      %vm212 = vmor %vm210, %vm211
      %v213 = vsel %vm212, %v205, %v209
      %v214 = vand.u32 2147483647, %v204
      %vm215 = vcmp.eq.f32.partialorder %v214, 8.507059e+37
      %v216 = vand.u32 %v204, 2147483648
      %v217 = vor.u32 1.1754944e-38, %v216
      %v218 = vsel %vm215, %v217, %v213
      %v219 = vmul.f32 1.0, %v218
      %v220 = vld [vmem:[%s1 + $0x30] sm:$0xff]
      %v221 = vld [vmem:[%s1 + $0x38] sm:$0xff]
      %v222 = vld [vmem:[%s1 + $0x40] sm:$0xff]
      %v223 = vld [vmem:[%s1 + $0x48] sm:$0xff]
      %v224 = vld [vmem:[%s1 + $0x90] sm:$0xff]
      %v225 = vld [vmem:[%s1 + $0x98] sm:$0xff]
      %v226 = vld [vmem:[%s1 + $0xa0] sm:$0xff]
      %v227 = vld [vmem:[%s1 + $0xa8] sm:$0xff]
      %228 = vmatpush.msra.mxu0 0.0
      %229 = vmatpush.msra.mxu0 0.0
      %230 = vmatpush.msra.mxu0 0.0
      %231 = vmatpush.msra.mxu0 0.0
      %232 = vmatpush.msra.mxu0 0.0
      %233 = vmatpush.msra.mxu0 0.0
      %234 = vmatpush.msra.mxu0 0.0
      %235 = vmatpush.msra.mxu0 0.0
      %236 = vmatpush.msra.mxu0 0.0
      %237 = vmatpush.msra.mxu0 0.0
      %238 = vmatpush.msra.mxu0 0.0
      %239 = vmatpush.msra.mxu0 0.0
      %240 = vmatpush.msra.mxu0 %v227
      %241 = vmatpush.msra.mxu0 %v226
      %242 = vmatpush.msra.mxu0 %v225
      %243 = vmatpush.msra.mxu0 %v224
      %244 = vmatmul.f32.gmra.mxu0 %v153
      %v245 = vpop.f32.mrf.mxu0
      %v246 = vadd.f32 0.0, %v245
      %247 = vdwg.mxu0
      %248 = vmatpush.msra.mxu0 0.0
      %249 = vmatpush.msra.mxu0 0.0
      %250 = vmatpush.msra.mxu0 0.0
      %251 = vmatpush.msra.mxu0 0.0
      %252 = vmatpush.msra.mxu0 0.0
      %253 = vmatpush.msra.mxu0 0.0
      %254 = vmatpush.msra.mxu0 0.0
      %255 = vmatpush.msra.mxu0 0.0
      %256 = vmatpush.msra.mxu0 0.0
      %257 = vmatpush.msra.mxu0 0.0
      %258 = vmatpush.msra.mxu0 0.0
      %259 = vmatpush.msra.mxu0 0.0
      %260 = vmatpush.msra.mxu0 %v223
      %261 = vmatpush.msra.mxu0 %v222
      %262 = vmatpush.msra.mxu0 %v221
      %263 = vmatpush.msra.mxu0 %v220
      %264 = vmatmul.f32.gmra.mxu0 %v176
      %v265 = vpop.f32.mrf.mxu0
      %v266 = vadd.f32 %v246, %v265
      %267 = vdwg.mxu0
      %v268 = vld [vmem:[%s1 + $0x1b1] sm:$0x1]
      %v269 = vperm.slane %v268, 0
      %v270 = vadd.f32 %v266, %v269
      %v271 = vxor.u32 %v270, 2147483648
      %v272 = vmul.f32 %v271, 1.442695
      %v273 = vpow.pop %v272
      %v274 = vadd.f32 %v273, 1.0
      %v275 = vrcp.pop %v274
      %v276 = vmul.f32 %v274, %v275
      %v277 = vsub.f32 1.0, %v276
      %v278 = vmul.f32 %v275, %v277
      %v279 = vadd.f32 %v275, %v278
      %vm280 = vweird.f32 %v274
      %vm281 = vweird.f32 %v275
      %vm282 = vmor %vm280, %vm281
      %v283 = vsel %vm282, %v275, %v279
      %v284 = vand.u32 2147483647, %v274
      %vm285 = vcmp.eq.f32.partialorder %v284, 8.507059e+37
      %v286 = vand.u32 %v274, 2147483648
      %v287 = vor.u32 1.1754944e-38, %v286
      %v288 = vsel %vm285, %v287, %v283
      %v289 = vmul.f32 1.0, %v288
      %v290 = vld [vmem:[%s1 + $0x50] sm:$0xff]
      %v291 = vld [vmem:[%s1 + $0x58] sm:$0xff]
      %v292 = vld [vmem:[%s1 + $0x60] sm:$0xff]
      %v293 = vld [vmem:[%s1 + $0x68] sm:$0xff]
      %v294 = vld [vmem:[%s1 + $0x1b2] sm:$0x1]
      %v295 = vperm.slane %v294, 0
      %296 = vmatpush.msra.mxu0 0.0
      %297 = vmatpush.msra.mxu0 0.0
      %298 = vmatpush.msra.mxu0 0.0
      %299 = vmatpush.msra.mxu0 0.0
      %300 = vmatpush.msra.mxu0 0.0
      %301 = vmatpush.msra.mxu0 0.0
      %302 = vmatpush.msra.mxu0 0.0
      %303 = vmatpush.msra.mxu0 0.0
      %304 = vmatpush.msra.mxu0 0.0
      %305 = vmatpush.msra.mxu0 0.0
      %306 = vmatpush.msra.mxu0 0.0
      %307 = vmatpush.msra.mxu0 0.0
      %308 = vmatpush.msra.mxu0 %v293
      %309 = vmatpush.msra.mxu0 %v292
      %310 = vmatpush.msra.mxu0 %v291
      %311 = vmatpush.msra.mxu0 %v290
      %312 = vmatmul.f32.gmra.mxu0 %v176
      %v313 = vpop.f32.mrf.mxu0
      %v314 = vadd.f32 %v295, %v313
      %315 = vdwg.mxu0
      %v316 = vld [vmem:[%s1 + $0xb0] sm:$0xff]
      %v317 = vld [vmem:[%s1 + $0xb8] sm:$0xff]
      %v318 = vld [vmem:[%s1 + $0xc0] sm:$0xff]
      %v319 = vld [vmem:[%s1 + $0xc8] sm:$0xff]
      %v320 = vld [vmem:[%s1 + $0x1b3] sm:$0x1]
      %v321 = vperm.slane %v320, 0
      %322 = vmatpush.msra.mxu0 0.0
      %323 = vmatpush.msra.mxu0 0.0
      %324 = vmatpush.msra.mxu0 0.0
      %325 = vmatpush.msra.mxu0 0.0
      %326 = vmatpush.msra.mxu0 0.0
      %327 = vmatpush.msra.mxu0 0.0
      %328 = vmatpush.msra.mxu0 0.0
      %329 = vmatpush.msra.mxu0 0.0
      %330 = vmatpush.msra.mxu0 0.0
      %331 = vmatpush.msra.mxu0 0.0
      %332 = vmatpush.msra.mxu0 0.0
      %333 = vmatpush.msra.mxu0 0.0
      %334 = vmatpush.msra.mxu0 %v319
      %335 = vmatpush.msra.mxu0 %v318
      %336 = vmatpush.msra.mxu0 %v317
      %337 = vmatpush.msra.mxu0 %v316
      %338 = vmatmul.f32.gmra.mxu0 %v153
      %v339 = vpop.f32.mrf.mxu0
      %v340 = vadd.f32 %v321, %v339
      %341 = vdwg.mxu0
      %v342 = vmul.f32 %v219, %v340
      %v343 = vadd.f32 %v314, %v342
      %v344 = vtanh.pop %v343
      %v345 = vsub.f32 1.0, %v289
      %v346 = vmul.f32 %v345, %v344
      %v347 = vmul.f32 %v289, %v143
      %v348 = vadd.f32 %v346, %v347
      %349 = vst.msk [vmem:[#allocation3] sm:$0xff] %vm19, %v348
      %s350 = scalar_lea.vmem [#allocation3], 8
      %v351 = vld [vmem:[%s350] sm:$0xff]
      %v352 = vld [vmem:[%s1 + $0xd0] sm:$0xff]
      %v353 = vld [vmem:[%s1 + $0xd8] sm:$0xff]
      %v354 = vld [vmem:[%s1 + $0xe0] sm:$0xff]
      %v355 = vld [vmem:[%s1 + $0xe8] sm:$0xff]
      %v356 = vld [vmem:[%s1 + $0x130] sm:$0xff]
      %v357 = vld [vmem:[%s1 + $0x138] sm:$0xff]
      %v358 = vld [vmem:[%s1 + $0x140] sm:$0xff]
      %v359 = vld [vmem:[%s1 + $0x148] sm:$0xff]
      %v361 = vsel %vm19, %v351, 0
      %363 = vmatpush.msra.mxu0 0.0
      %364 = vmatpush.msra.mxu0 0.0
      %365 = vmatpush.msra.mxu0 0.0
      %366 = vmatpush.msra.mxu0 0.0
      %367 = vmatpush.msra.mxu0 0.0
      %368 = vmatpush.msra.mxu0 0.0
      %369 = vmatpush.msra.mxu0 0.0
      %370 = vmatpush.msra.mxu0 0.0
      %371 = vmatpush.msra.mxu0 0.0
      %372 = vmatpush.msra.mxu0 0.0
      %373 = vmatpush.msra.mxu0 0.0
      %374 = vmatpush.msra.mxu0 0.0
      %375 = vmatpush.msra.mxu0 %v359
      %376 = vmatpush.msra.mxu0 %v358
      %377 = vmatpush.msra.mxu0 %v357
      %378 = vmatpush.msra.mxu0 %v356
      %379 = vmatmul.f32.gmra.mxu0 %v361
      %v380 = vpop.f32.mrf.mxu0
      %v381 = vadd.f32 0.0, %v380
      %382 = vdwg.mxu0
      %v384 = vsel %vm19, %v348, 0
      %386 = vmatpush.msra.mxu0 0.0
      %387 = vmatpush.msra.mxu0 0.0
      %388 = vmatpush.msra.mxu0 0.0
      %389 = vmatpush.msra.mxu0 0.0
      %390 = vmatpush.msra.mxu0 0.0
      %391 = vmatpush.msra.mxu0 0.0
      %392 = vmatpush.msra.mxu0 0.0
      %393 = vmatpush.msra.mxu0 0.0
      %394 = vmatpush.msra.mxu0 0.0
      %395 = vmatpush.msra.mxu0 0.0
      %396 = vmatpush.msra.mxu0 0.0
      %397 = vmatpush.msra.mxu0 0.0
      %398 = vmatpush.msra.mxu0 %v355
      %399 = vmatpush.msra.mxu0 %v354
      %400 = vmatpush.msra.mxu0 %v353
      %401 = vmatpush.msra.mxu0 %v352
      %402 = vmatmul.f32.gmra.mxu0 %v384
      %v403 = vpop.f32.mrf.mxu0
      %v404 = vadd.f32 %v381, %v403
      %405 = vdwg.mxu0
      %v406 = vld [vmem:[%s1 + $0x1b4] sm:$0x1]
      %v407 = vperm.slane %v406, 0
      %v408 = vadd.f32 %v404, %v407
      %v409 = vxor.u32 %v408, 2147483648
      %v410 = vmul.f32 %v409, 1.442695
      %v411 = vpow.pop %v410
      %v412 = vadd.f32 %v411, 1.0
      %v413 = vrcp.pop %v412
      %v414 = vmul.f32 %v412, %v413
      %v415 = vsub.f32 1.0, %v414
      %v416 = vmul.f32 %v413, %v415
      %v417 = vadd.f32 %v413, %v416
      %vm418 = vweird.f32 %v412
      %vm419 = vweird.f32 %v413
      %vm420 = vmor %vm418, %vm419
      %v421 = vsel %vm420, %v413, %v417
      %v422 = vand.u32 2147483647, %v412
      %vm423 = vcmp.eq.f32.partialorder %v422, 8.507059e+37
      %v424 = vand.u32 %v412, 2147483648
      %v425 = vor.u32 1.1754944e-38, %v424
      %v426 = vsel %vm423, %v425, %v421
      %v427 = vmul.f32 1.0, %v426
      %v428 = vld [vmem:[%s1 + $0xf0] sm:$0xff]
      %v429 = vld [vmem:[%s1 + $0xf8] sm:$0xff]
      %v430 = vld [vmem:[%s1 + $0x100] sm:$0xff]
      %v431 = vld [vmem:[%s1 + $0x108] sm:$0xff]
      %v432 = vld [vmem:[%s1 + $0x150] sm:$0xff]
      %v433 = vld [vmem:[%s1 + $0x158] sm:$0xff]
      %v434 = vld [vmem:[%s1 + $0x160] sm:$0xff]
      %v435 = vld [vmem:[%s1 + $0x168] sm:$0xff]
      %436 = vmatpush.msra.mxu0 0.0
      %437 = vmatpush.msra.mxu0 0.0
      %438 = vmatpush.msra.mxu0 0.0
      %439 = vmatpush.msra.mxu0 0.0
      %440 = vmatpush.msra.mxu0 0.0
      %441 = vmatpush.msra.mxu0 0.0
      %442 = vmatpush.msra.mxu0 0.0
      %443 = vmatpush.msra.mxu0 0.0
      %444 = vmatpush.msra.mxu0 0.0
      %445 = vmatpush.msra.mxu0 0.0
      %446 = vmatpush.msra.mxu0 0.0
      %447 = vmatpush.msra.mxu0 0.0
      %448 = vmatpush.msra.mxu0 %v435
      %449 = vmatpush.msra.mxu0 %v434
      %450 = vmatpush.msra.mxu0 %v433
      %451 = vmatpush.msra.mxu0 %v432
      %452 = vmatmul.f32.gmra.mxu0 %v361
      %v453 = vpop.f32.mrf.mxu0
      %v454 = vadd.f32 0.0, %v453
      %455 = vdwg.mxu0
      %456 = vmatpush.msra.mxu0 0.0
      %457 = vmatpush.msra.mxu0 0.0
      %458 = vmatpush.msra.mxu0 0.0
      %459 = vmatpush.msra.mxu0 0.0
      %460 = vmatpush.msra.mxu0 0.0
      %461 = vmatpush.msra.mxu0 0.0
      %462 = vmatpush.msra.mxu0 0.0
      %463 = vmatpush.msra.mxu0 0.0
      %464 = vmatpush.msra.mxu0 0.0
      %465 = vmatpush.msra.mxu0 0.0
      %466 = vmatpush.msra.mxu0 0.0
      %467 = vmatpush.msra.mxu0 0.0
      %468 = vmatpush.msra.mxu0 %v431
      %469 = vmatpush.msra.mxu0 %v430
      %470 = vmatpush.msra.mxu0 %v429
      %471 = vmatpush.msra.mxu0 %v428
      %472 = vmatmul.f32.gmra.mxu0 %v384
      %v473 = vpop.f32.mrf.mxu0
      %v474 = vadd.f32 %v454, %v473
      %475 = vdwg.mxu0
      %v476 = vld [vmem:[%s1 + $0x1b5] sm:$0x1]
      %v477 = vperm.slane %v476, 0
      %v478 = vadd.f32 %v474, %v477
      %v479 = vxor.u32 %v478, 2147483648
      %v480 = vmul.f32 %v479, 1.442695
      %v481 = vpow.pop %v480
      %v482 = vadd.f32 %v481, 1.0
      %v483 = vrcp.pop %v482
      %v484 = vmul.f32 %v482, %v483
      %v485 = vsub.f32 1.0, %v484
      %v486 = vmul.f32 %v483, %v485
      %v487 = vadd.f32 %v483, %v486
      %vm488 = vweird.f32 %v482
      %vm489 = vweird.f32 %v483
      %vm490 = vmor %vm488, %vm489
      %v491 = vsel %vm490, %v483, %v487
      %v492 = vand.u32 2147483647, %v482
      %vm493 = vcmp.eq.f32.partialorder %v492, 8.507059e+37
      %v494 = vand.u32 %v482, 2147483648
      %v495 = vor.u32 1.1754944e-38, %v494
      %v496 = vsel %vm493, %v495, %v491
      %v497 = vmul.f32 1.0, %v496
      %v498 = vld [vmem:[%s1 + $0x110] sm:$0xff]
      %v499 = vld [vmem:[%s1 + $0x118] sm:$0xff]
      %v500 = vld [vmem:[%s1 + $0x120] sm:$0xff]
      %v501 = vld [vmem:[%s1 + $0x128] sm:$0xff]
      %v502 = vld [vmem:[%s1 + $0x1b6] sm:$0x1]
      %v503 = vperm.slane %v502, 0
      %504 = vmatpush.msra.mxu0 0.0
      %505 = vmatpush.msra.mxu0 0.0
      %506 = vmatpush.msra.mxu0 0.0
      %507 = vmatpush.msra.mxu0 0.0
      %508 = vmatpush.msra.mxu0 0.0
      %509 = vmatpush.msra.mxu0 0.0
      %510 = vmatpush.msra.mxu0 0.0
      %511 = vmatpush.msra.mxu0 0.0
      %512 = vmatpush.msra.mxu0 0.0
      %513 = vmatpush.msra.mxu0 0.0
      %514 = vmatpush.msra.mxu0 0.0
      %515 = vmatpush.msra.mxu0 0.0
      %516 = vmatpush.msra.mxu0 %v501
      %517 = vmatpush.msra.mxu0 %v500
      %518 = vmatpush.msra.mxu0 %v499
      %519 = vmatpush.msra.mxu0 %v498
      %520 = vmatmul.f32.gmra.mxu0 %v384
      %v521 = vpop.f32.mrf.mxu0
      %v522 = vadd.f32 %v503, %v521
      %523 = vdwg.mxu0
      %v524 = vld [vmem:[%s1 + $0x170] sm:$0xff]
      %v525 = vld [vmem:[%s1 + $0x178] sm:$0xff]
      %v526 = vld [vmem:[%s1 + $0x180] sm:$0xff]
      %v527 = vld [vmem:[%s1 + $0x188] sm:$0xff]
      %v528 = vld [vmem:[%s1 + $0x1b7] sm:$0x1]
      %v529 = vperm.slane %v528, 0
      %530 = vmatpush.msra.mxu0 0.0
      %531 = vmatpush.msra.mxu0 0.0
      %532 = vmatpush.msra.mxu0 0.0
      %533 = vmatpush.msra.mxu0 0.0
      %534 = vmatpush.msra.mxu0 0.0
      %535 = vmatpush.msra.mxu0 0.0
      %536 = vmatpush.msra.mxu0 0.0
      %537 = vmatpush.msra.mxu0 0.0
      %538 = vmatpush.msra.mxu0 0.0
      %539 = vmatpush.msra.mxu0 0.0
      %540 = vmatpush.msra.mxu0 0.0
      %541 = vmatpush.msra.mxu0 0.0
      %542 = vmatpush.msra.mxu0 %v527
      %543 = vmatpush.msra.mxu0 %v526
      %544 = vmatpush.msra.mxu0 %v525
      %545 = vmatpush.msra.mxu0 %v524
      %546 = vmatmul.f32.gmra.mxu0 %v361
      %v547 = vpop.f32.mrf.mxu0
      %v548 = vadd.f32 %v529, %v547
      %549 = vdwg.mxu0
      %v550 = vmul.f32 %v427, %v548
      %v551 = vadd.f32 %v522, %v550
      %v552 = vtanh.pop %v551
      %v553 = vsub.f32 1.0, %v497
      %v554 = vmul.f32 %v553, %v552
      %v555 = vmul.f32 %v497, %v351
      %v556 = vadd.f32 %v554, %v555
      %557 = vst.msk [vmem:[%s350] sm:$0xff] %vm19, %v556
      %v558 = vld [vmem:[%s1 + $0x190] sm:$0xff]
      %v559 = vld [vmem:[%s1 + $0x198] sm:$0xff]
      %v560 = vld [vmem:[%s1 + $0x1a0] sm:$0xff]
      %v561 = vld [vmem:[%s1 + $0x1a8] sm:$0xff]
      %v562 = vld [vmem:[%s1 + $0x1b8] sm:$0x1]
      %v563 = vperm.slane %v562, 0
      %v565 = vsel %vm19, %v556, 0
      %567 = vmatpush.msra.mxu0 0.0
      %568 = vmatpush.msra.mxu0 0.0
      %569 = vmatpush.msra.mxu0 0.0
      %570 = vmatpush.msra.mxu0 0.0
      %571 = vmatpush.msra.mxu0 0.0
      %572 = vmatpush.msra.mxu0 0.0
      %573 = vmatpush.msra.mxu0 0.0
      %574 = vmatpush.msra.mxu0 0.0
      %575 = vmatpush.msra.mxu0 0.0
      %576 = vmatpush.msra.mxu0 0.0
      %577 = vmatpush.msra.mxu0 0.0
      %578 = vmatpush.msra.mxu0 0.0
      %579 = vmatpush.msra.mxu0 %v561
      %580 = vmatpush.msra.mxu0 %v560
      %581 = vmatpush.msra.mxu0 %v559
      %582 = vmatpush.msra.mxu0 %v558
      %583 = vmatmul.f32.gmra.mxu0 %v565
      %v584 = vpop.f32.mrf.mxu0
      %v585 = vadd.f32 %v563, %v584
      %586 = vdwg.mxu0
      %v587 = vsel %vm68, %v585, -inf
      %588 = vmax.xlane.f32.xlu0 %v587
      %v589 = vpop.xlane.xlu0 %588
      %v590 = vsub.f32 %v585, %v589
      %v591 = vmul.f32 %v590, 1.442695
      %v592 = vpow.pop %v591
      %v593 = vsel %vm68, %v592, 0.0
      %594 = vadd.xlane.f32.xlu0 %v593
      %v595 = vpop.xlane.xlu0 %594
      %v596 = vlog2.pop %v595
      %v597 = vmul.f32 %v596, 0.6931472
      %v598 = vsub.f32 %v590, %v597
      %s599 = scalar_lea.vmem %s3, %s140
      %600 = vst.msk [vmem:[%s599] sm:$0xff] %vm68, %v598
    $region18: #{tpu_custom_call.1} parent=1 // loop_footer
      %s139 = sadd.s32 1, %s135
    $region19: #{tpu_custom_call.1} parent=1 // loop_footer_branch
      %134 = sbr.rel target = $region15
    $region20: #{tpu_custom_call.1} parent=1 // loop_exit
      _
    %v601 = vld [vmem:[#allocation3] sm:$0xff]
    %v602 = vld [vmem:[#allocation3 + $0x8] sm:$0xff]
    %603 = vst.msk [vmem:[#allocation4] sm:$0xff] %vm19, %v601
    %604 = vst.msk [vmem:[#allocation4 + $0x8] sm:$0xff] %vm19, %v602
    // Predicated region
    $region21: #{tpu_custom_call.1} parent=1 // pred_check
      _
    $region22: #{tpu_custom_call.1} parent=1 // pred_check_branch
      %606 = sbr.rel (0) target = $region24
    $region23: #{tpu_custom_call.1} parent=1 // pred_region
      _
    $region24: #{tpu_custom_call.1} parent=1 // pred_fallthru
      _
    // Predicated region
    $region25: #{tpu_custom_call.1} parent=1 // pred_check
      _
    $region26: #{tpu_custom_call.1} parent=1 // pred_check_branch
      %608 = sbr.rel (0) target = $region28
    $region27: #{tpu_custom_call.1} parent=1 // pred_region
      %610 = vsyncadd [#allocation5], 0
      %s611 = sshll.u32 [#allocation4], 4
      %s612 = int_to_ptr.vmem [resolvable:$true] %s611
      %s613 = sshll.u32 %s4, 4
      %s614 = int_to_ptr.hbm [resolvable:$true] %s613
      %619 = dma.vmem_to_hbm [thread:$0]  %s612, 256, %s614, [#allocation5], 128, 128, 8
    $region28: #{tpu_custom_call.1} parent=1 // pred_fallthru
      _
    // Predicated region
    $region29: #{tpu_custom_call.1} parent=1 // pred_check
      _
    $region30: #{tpu_custom_call.1} parent=1 // pred_check_branch
      %621 = sbr.rel (0) target = $region32
    $region31: #{tpu_custom_call.1} parent=1 // pred_region
      _
    $region32: #{tpu_custom_call.1} parent=1 // pred_fallthru
      _
    // Predicated region
    $region33: #{tpu_custom_call.1} parent=1 // pred_check
      _
    $region34: #{tpu_custom_call.1} parent=1 // pred_check_branch
      %623 = sbr.rel (0) target = $region36
    $region35: #{tpu_custom_call.1} parent=1 // pred_region
      %625 = dma.done [#allocation5], 256
    $region36: #{tpu_custom_call.1} parent=1 // pred_fallthru
      _
    %626 = vsyncpa [#allocation5], 1

</llo_original>
